<compile_context>
chip_gen: v5e
topology: v5e:2x2
jax: 0.10.0
libtpu: 0.0.40
codegen_flags: <defaults>
</compile_context>

<pallas_src>
import math
import jax
import jax.numpy as jnp
from jax.experimental import pallas as pl
from jax.experimental.pallas import tpu as pltpu

LANE = 128
SUB = 8
NEG_INF = -1e30


# --------------------------------- helpers ----------------------------------

def _round_up(x, m):
    return ((x + m - 1) // m) * m


def _pad2(x, rows, cols):
    r, c = x.shape
    if r == rows and c == cols:
        return x
    return jnp.pad(x, ((0, rows - r), (0, cols - c)))


def _prep_rows(x, rows_p, dtype):
    """Pad rows only (feature dim stays full-width -> no extra HBM pass) + cast."""
    r, _ = x.shape
    if r != rows_p:
        x = jnp.pad(x, ((0, rows_p - r), (0, 0)))
    return x.astype(dtype)


def _vmem_limit_bytes():
    """Per-generation scoped-VMEM budget: ~75% of physical, capped at 100 MiB.
    v5e/v6e (128 MiB physical) -> 96 MiB; v7x (64 MiB physical) -> 48 MiB."""
    cap = 64 * 1024 * 1024
    try:
        cap = int(pltpu.get_tpu_info().vmem_capacity_bytes)
    except Exception:
        pass
    return max(32 * 1024 * 1024, min(cap * 3 // 4, 100 * 1024 * 1024))


def _pick_row_tile(n, target):
    """Tile (multiple of 8) <= target with bounded row-padding waste."""
    n8 = _round_up(n, SUB)
    if n8 <= target:
        return n8
    t = target                      # power-of-two multiple of 8
    while t > SUB:
        if _round_up(n, t) - n <= max(SUB, n // 8):
            return t
        t //= 2
    return SUB


def _pick_divisor_tile(n_p, target):
    """Largest multiple of 8 dividing n_p (a multiple of 8) and <= target."""
    best = SUB
    d = SUB
    top = min(n_p, target)
    while d <= top:
        if n_p % d == 0:
            best = d
        d += SUB
    return best


def _fits_resident(n_k_p, d_h_p, tq, tk, vmem_limit):
    kv_bytes = 2 * 2 * n_k_p * d_h_p * 2      # Kp+Vp bf16, 2x-buffer budget
    step_bytes = tq * tk * 12                 # live s(f32) / p / exp temporaries
    fixed_bytes = tq * d_h_p * 24 + (2 << 20)  # scratch + q/out buffers + slack
    return kv_bytes + step_bytes + fixed_bytes <= (vmem_limit * 7) // 10


# ----------------------- fused K/V projection kernel -------------------------

def _kv_proj_kernel(k_ref, wk_ref, bk_ref, v_ref, wv_ref, bv_ref, kp_ref, vp_ref):
    kp_ref[...] = (jnp.dot(k_ref[...], wk_ref[...],
                           preferred_element_type=jnp.float32)
                   + bk_ref[...]).astype(kp_ref.dtype)
    vp_ref[...] = (jnp.dot(v_ref[...], wv_ref[...],
                           preferred_element_type=jnp.float32)
                   + bv_ref[...]).astype(vp_ref.dtype)


def _kv_projection(k_pad, wk_t, bk2, v_pad, wv_t, bv2, *, tile_rows, vmem_limit):
    n_p, d_k = k_pad.shape
    d_v = v_pad.shape[1]
    d_h_p = wk_t.shape[1]
    flops = 2 * n_p * (d_k + d_v) * d_h_p
    bytes_accessed = (2 * n_p * (d_k + d_v) + 2 * (d_k + d_v) * d_h_p
                      + 8 * d_h_p + 4 * n_p * d_h_p)
    return pl.pallas_call(
        _kv_proj_kernel,
        out_shape=(jax.ShapeDtypeStruct((n_p, d_h_p), jnp.bfloat16),
                   jax.ShapeDtypeStruct((n_p, d_h_p), jnp.bfloat16)),
        grid=(n_p // tile_rows,),
        in_specs=[pl.BlockSpec((tile_rows, d_k), lambda i: (i, 0)),
                  pl.BlockSpec((d_k, d_h_p), lambda i: (0, 0)),
                  pl.BlockSpec((1, d_h_p), lambda i: (0, 0)),
                  pl.BlockSpec((tile_rows, d_v), lambda i: (i, 0)),
                  pl.BlockSpec((d_v, d_h_p), lambda i: (0, 0)),
                  pl.BlockSpec((1, d_h_p), lambda i: (0, 0))],
        out_specs=(pl.BlockSpec((tile_rows, d_h_p), lambda i: (i, 0)),
                   pl.BlockSpec((tile_rows, d_h_p), lambda i: (i, 0))),
        compiler_params=pltpu.CompilerParams(
            dimension_semantics=("parallel",),
            vmem_limit_bytes=vmem_limit),
        cost_estimate=pl.CostEstimate(flops=flops, transcendentals=0,
                                      bytes_accessed=bytes_accessed),
    )(k_pad, wk_t, bk2, v_pad, wv_t, bv2)


# -------------------------- flash attention kernel ---------------------------

def _make_attn_kernel(*, n_k, tk, resident, mask_kv):
    def kernel(q_ref, wq_ref, bq_ref, kp_ref, vp_ref, y_ref,
               qp_sc, m_sc, l_sc, acc_sc):
        j = pl.program_id(1)

        @pl.when(j == 0)
        def _init():
            # Fused, pre-scaled Q projection (1/sqrt(d_h) folded into wq/bq),
            # computed once per q tile; stored bf16 for the MXU.
            qp = (jnp.dot(q_ref[...], wq_ref[...],
                          preferred_element_type=jnp.float32) + bq_ref[...])
            qp_sc[...] = qp.astype(qp_sc.dtype)
            m_sc[...] = jnp.full(m_sc.shape, NEG_INF, jnp.float32)
            l_sc[...] = jnp.zeros(l_sc.shape, jnp.float32)
            acc_sc[...] = jnp.zeros(acc_sc.shape, jnp.float32)

        if resident:
            # Kp/Vp are fully VMEM-resident (single HBM read for the whole
            # grid); take the current kv chunk with a cheap sublane slice.
            align = tk & (-tk)
            start = pl.multiple_of(j * tk, min(align, 256))
            kp_t = kp_ref[pl.ds(start, tk), :]
            vp_t = vp_ref[pl.ds(start, tk), :]
        else:
            kp_t = kp_ref[...]
            vp_t = vp_ref[...]

        # Scores: bf16 x bf16 -> f32, contracting d_h of both operands
        # (no explicit in-kernel transpose).
        s = jax.lax.dot_general(
            qp_sc[...], kp_t,
            dimension_numbers=(((1,), (1,)), ((), ())),
            preferred_element_type=jnp.float32)

        if mask_kv:
            # Row-vector predicate ([1, tk]) -> a single full-tile select per
            # kv step; only the last kv tile actually has padded columns.
            kv_pos = j * tk + jax.lax.broadcasted_iota(jnp.int32, (1, tk), 1)
            s = jnp.where(kv_pos < n_k, s, NEG_INF)

        # Online (flash) softmax update, f32 on VPU/EUP (mandatory on v5e).
        m_prev = m_sc[...]
        m_new = jnp.maximum(m_prev, jnp.max(s, axis=-1, keepdims=True))
        alpha = jnp.exp(m_prev - m_new)
        p = jnp.exp(s - m_new)
        l_sc[...] = alpha * l_sc[...] + jnp.sum(p, axis=-1, keepdims=True)
        acc_sc[...] = alpha * acc_sc[...] + jnp.dot(
            p.astype(jnp.bfloat16), vp_t, preferred_element_type=jnp.float32)
        m_sc[...] = m_new

        @pl.when(j == pl.num_programs(1) - 1)
        def _finalize():
            # Deferred normalization with EUP approximate reciprocal.
            y_ref[...] = (acc_sc[...] *
                          pl.reciprocal(l_sc[...], approx=True)
                          ).astype(y_ref.dtype)

    return kernel


def _flash_attention(q_pad, wq_t, bq2, kp, vp, *, n_k, tq, tk, resident,
                     vmem_limit):
    n_q_p, d_q = q_pad.shape
    n_k_p, d_h_p = kp.shape
    gq, gkv = n_q_p // tq, n_k_p // tk
    kernel = _make_attn_kernel(n_k=n_k, tk=tk, resident=resident,
                               mask_kv=(n_k_p != n_k))

    if resident:
        # Constant block index -> DMA'd once, stays resident across the grid.
        kv_spec = pl.BlockSpec((n_k_p, d_h_p), lambda i, j: (0, 0))
        kv_read_mult = 1
    else:
        # TODO(synk): consider pipeline_mode=pl.Buffered(3) here if profiling
        # shows exposed DMA on the streamed Kp/Vp tiles.
        kv_spec = pl.BlockSpec((tk, d_h_p), lambda i, j: (j, 0))
        kv_read_mult = gq

    flops = 2 * n_q_p * d_q * d_h_p + 4 * n_q_p * n_k_p * d_h_p
    bytes_accessed = (2 * n_q_p * d_q + 2 * d_q * d_h_p + 4 * d_h_p
                      + kv_read_mult * 4 * n_k_p * d_h_p
                      + 4 * n_q_p * d_h_p)
    return pl.pallas_call(
        kernel,
        out_shape=jax.ShapeDtypeStruct((n_q_p, d_h_p), jnp.float32),
        grid=(gq, gkv),
        in_specs=[pl.BlockSpec((tq, d_q), lambda i, j: (i, 0)),
                  pl.BlockSpec((d_q, d_h_p), lambda i, j: (0, 0)),
                  pl.BlockSpec((1, d_h_p), lambda i, j: (0, 0)),
                  kv_spec, kv_spec],
        out_specs=pl.BlockSpec((tq, d_h_p), lambda i, j: (i, 0)),
        scratch_shapes=[pltpu.VMEM((tq, d_h_p), jnp.bfloat16),   # projected Q
                        pltpu.VMEM((tq, 1), jnp.float32),        # running max
                        pltpu.VMEM((tq, 1), jnp.float32),        # running sum
                        pltpu.VMEM((tq, d_h_p), jnp.float32)],   # accumulator
        compiler_params=pltpu.CompilerParams(
            dimension_semantics=("parallel", "arbitrary"),
            vmem_limit_bytes=vmem_limit),
        cost_estimate=pl.CostEstimate(
            flops=flops,
            transcendentals=n_q_p * n_k_p,
            bytes_accessed=bytes_accessed),
    )(q_pad, wq_t, bq2, kp, vp)


# ---------------------------------- wrapper ----------------------------------

def single_head_attention(Q, K, V, params, d_h, *, tq=None, tk=None,
                          force_streamed=False):
    """Q:[n_q,d_q], K:[n_k,d_k], V:[n_k,d_v] -> Y:[n_q,d_h] (float32)."""
    Wq, bq, Wk, bk, Wv, bv = params
    n_q, d_q = Q.shape
    n_k, d_k = K.shape
    d_v = V.shape[1]

    scale = 1.0 / math.sqrt(float(d_h))
    d_h_p = _round_up(d_h, LANE)           # lane-dense projected/attention dim
    vmem_limit = _vmem_limit_bytes()

    # ---- row tiling (feature dims stay unpadded: full-dim blocks are legal) ----
    if tq is None:
        tq_e = _pick_row_tile(n_q, 256)
        n_q_p = _round_up(n_q, tq_e)
        # Prefer >= 2 q tiles so the "parallel" axis feeds both v7x TensorCores.
        if n_q_p // tq_e < 2 and n_q >= 2 * SUB:
            half = _round_up((n_q + 1) // 2, SUB)
            if 2 * half - n_q <= max(SUB, n_q // 8):
                tq_e = half
                n_q_p = _round_up(n_q, tq_e)
    else:
        tq_e = min(_round_up(tq, SUB), _round_up(n_q, SUB))
        n_q_p = _round_up(n_q, tq_e)

    if tk is None:
        tk_e = _pick_row_tile(n_k, 512)    # 256-wide-MXU friendly kv tiles
    else:
        tk_e = min(_round_up(tk, SUB), _round_up(n_k, SUB))
    n_k_p = _round_up(n_k, tk_e)

    resident = (not force_streamed) and _fits_resident(
        n_k_p, d_h_p, tq_e, tk_e, vmem_limit)

    # ---- operands: bf16 activations/weights (f32 MXU accumulation), f32 biases;
    #      1/sqrt(d_h) folded into the Q projection (free). Row pad + cast fuse
    #      into a single HBM pass; feature dims are NOT padded. ----
    q_pad = _prep_rows(Q, n_q_p, jnp.bfloat16)
    k_pad = _prep_rows(K, n_k_p, jnp.bfloat16)
    v_pad = _prep_rows(V, n_k_p, jnp.bfloat16)

    wq_t = _pad2(Wq.T * scale, d_q, d_h_p).astype(jnp.bfloat16)
    bq2 = _pad2((bq * scale).reshape(1, -1), 1, d_h_p).astype(jnp.float32)
    wk_t = _pad2(Wk.T, d_k, d_h_p).astype(jnp.bfloat16)
    bk2 = _pad2(bk.reshape(1, -1), 1, d_h_p).astype(jnp.float32)
    wv_t = _pad2(Wv.T, d_v, d_h_p).astype(jnp.bfloat16)
    bv2 = _pad2(bv.reshape(1, -1), 1, d_h_p).astype(jnp.float32)

    # Stage 1: fused K & V projection (one pallas_call, large row tiles),
    # hoisted out of the q loop and run exactly once.
    proj_tile = _pick_divisor_tile(n_k_p, 1024)
    kp, vp = _kv_projection(k_pad, wk_t, bk2, v_pad, wv_t, bv2,
                            tile_rows=proj_tile, vmem_limit=vmem_limit)

    # Stage 2: flash-style attention with fused, pre-scaled Q projection.
    y_pad = _flash_attention(q_pad, wq_t, bq2, kp, vp, n_k=n_k,
                             tq=tq_e, tk=tk_e, resident=resident,
                             vmem_limit=vmem_limit)
    return y_pad[:n_q, :d_h]


# ------------------------------ init / reference -----------------------------

def init_params(key, d_q, d_k, d_v, d_h):
    """Deterministic init mirroring nn.Linear shapes: W:[d_h, d_in], b:[d_h]."""
    ks = jax.random.split(key, 6)

    def lin(kw, kb, d_in):
        bound = 1.0 / math.sqrt(d_in)
        W = jax.random.uniform(kw, (d_h, d_in), jnp.float32, -bound, bound)
        b = jax.random.uniform(kb, (d_h,), jnp.float32, -bound, bound)
        return W, b

    Wq, bq = lin(ks[0], ks[1], d_q)
    Wk, bk = lin(ks[2], ks[3], d_k)
    Wv, bv = lin(ks[4], ks[5], d_v)
    return (Wq, bq, Wk, bk, Wv, bv)


def reference(Q, K, V, params, d_h):
    Wq, bq, Wk, bk, Wv, bv = params
    hi = jax.lax.Precision.HIGHEST
    Qp = jnp.dot(Q, Wq.T, precision=hi) + bq
    Kp = jnp.dot(K, Wk.T, precision=hi) + bk
    Vp = jnp.dot(V, Wv.T, precision=hi) + bv
    S = jnp.dot(Qp, Kp.T, precision=hi) / jnp.sqrt(jnp.float32(d_h))
    A = jax.nn.softmax(S, axis=-1)
    return jnp.dot(A, Vp, precision=hi)


def _run_case(key, n_q, n_k, d_q, d_k, d_v, d_h, tol, **kw):
    kq, kk, kv, kpar = jax.random.split(key, 4)
    Q = jax.random.normal(kq, (n_q, d_q), jnp.float32)
    K = jax.random.normal(kk, (n_k, d_k), jnp.float32)
    V = jax.random.normal(kv, (n_k, d_v), jnp.float32)
    params = init_params(kpar, d_q, d_k, d_v, d_h)

    Y = jax.block_until_ready(single_head_attention(Q, K, V, params, d_h, **kw))
    Y_ref = reference(Q, K, V, params, d_h)

    assert Y.shape == (n_q, d_h)
    err = float(jnp.max(jnp.abs(Y - Y_ref)))
    assert jnp.allclose(Y, Y_ref, atol=tol, rtol=tol), f"max abs err {err}"


if __name__ == "__main__":
    key = jax.random.PRNGKey(0)
    k1, k2, k3, k4 = jax.random.split(key, 4)
    # Small shapes from the module docstring: single tile, resident KV, no mask.
    _run_case(k1, n_q=8, n_k=8, d_q=16, d_k=16, d_v=16, d_h=32, tol=2e-2)
    # Non-aligned shapes: 2 q tiles (megacore), resident KV, kv-pad masking.
    _run_case(k2, n_q=200, n_k=300, d_q=24, d_k=40, d_v=56, d_h=48, tol=2e-2)
    # Force the streamed-KV flash path (multiple kv tiles + masking).
    _run_case(k3, n_q=200, n_k=300, d_q=24, d_k=40, d_v=56, d_h=48, tol=2e-2,
              tk=128, force_streamed=True)
    # Resident KV with multiple kv tiles (exercises in-VMEM kv slicing).
    _run_case(k4, n_q=200, n_k=300, d_q=24, d_k=40, d_v=56, d_h=48, tol=2e-2,
              tk=128)
    print("KERNEL_OK")
</pallas_src>

<mosaic_0001>
module attributes {stable_mosaic.version = 11 : i64} {
  func.func @_kv_proj_kernel(%arg0: i32, %arg1: memref<8x16xbf16, #tpu.memory_space<vmem>>, %arg2: memref<16x128xbf16, #tpu.memory_space<vmem>>, %arg3: memref<1x128xf32, #tpu.memory_space<vmem>>, %arg4: memref<8x16xbf16, #tpu.memory_space<vmem>>, %arg5: memref<16x128xbf16, #tpu.memory_space<vmem>>, %arg6: memref<1x128xf32, #tpu.memory_space<vmem>>, %arg7: memref<8x128xbf16, #tpu.memory_space<vmem>>, %arg8: memref<8x128xbf16, #tpu.memory_space<vmem>>) attributes {dimension_semantics = [#tpu.dimension_semantics<parallel>], iteration_bounds = array<i64: 1>, scalar_prefetch = 0 : i64, scratch_operands = 0 : i64, tpu.core_type = #tpu.core_type<tc>, window_params = [{transform_indices = @transform_0, window_bounds = array<i64: 8, 16>}, {pipeline_mode = #tpu.pipeline_mode<synchronous>, transform_indices = @transform_1, window_bounds = array<i64: 16, 128>}, {pipeline_mode = #tpu.pipeline_mode<synchronous>, transform_indices = @transform_2, window_bounds = array<i64: 1, 128>}, {transform_indices = @transform_3, window_bounds = array<i64: 8, 16>}, {pipeline_mode = #tpu.pipeline_mode<synchronous>, transform_indices = @transform_4, window_bounds = array<i64: 16, 128>}, {pipeline_mode = #tpu.pipeline_mode<synchronous>, transform_indices = @transform_5, window_bounds = array<i64: 1, 128>}, {transform_indices = @transform_6, window_bounds = array<i64: 8, 128>}, {transform_indices = @transform_7, window_bounds = array<i64: 8, 128>}]} {
    %c0 = arith.constant 0 : index
    %c0_0 = arith.constant 0 : index
    %0 = vector.load %arg1[%c0, %c0_0] : memref<8x16xbf16, #tpu.memory_space<vmem>>, vector<8x16xbf16>
    %c0_1 = arith.constant 0 : index
    %c0_2 = arith.constant 0 : index
    %1 = vector.load %arg2[%c0_1, %c0_2] : memref<16x128xbf16, #tpu.memory_space<vmem>>, vector<16x128xbf16>
    %cst = arith.constant dense<0.000000e+00> : vector<8x128xf32>
    %2 = tpu.matmul %0, %1, %cst {dimension_numbers = #tpu.dot_dimension_numbers<[1], [0], [0], [1], [0, 0, 1, 1], [], []>} : vector<8x16xbf16>, vector<16x128xbf16>, vector<8x128xf32> -> vector<8x128xf32>
    %c0_3 = arith.constant 0 : index
    %c0_4 = arith.constant 0 : index
    %3 = vector.load %arg3[%c0_3, %c0_4] : memref<1x128xf32, #tpu.memory_space<vmem>>, vector<1x128xf32>
    %4 = vector.broadcast %3 : vector<1x128xf32> to vector<8x128xf32>
    %5 = arith.addf %2, %4 : vector<8x128xf32>
    %6 = arith.truncf %5 : vector<8x128xf32> to vector<8x128xbf16>
    %c0_5 = arith.constant 0 : index
    %c0_6 = arith.constant 0 : index
    %7 = vector.load %arg7[%c0_5, %c0_6] : memref<8x128xbf16, #tpu.memory_space<vmem>>, vector<8x128xbf16>
    tpu.vector_store %arg7[%c0_5, %c0_6], %6 {strides = array<i32>} : memref<8x128xbf16, #tpu.memory_space<vmem>>, vector<8x128xbf16>,
    %c0_7 = arith.constant 0 : index
    %c0_8 = arith.constant 0 : index
    %8 = vector.load %arg4[%c0_7, %c0_8] : memref<8x16xbf16, #tpu.memory_space<vmem>>, vector<8x16xbf16>
    %c0_9 = arith.constant 0 : index
    %c0_10 = arith.constant 0 : index
    %9 = vector.load %arg5[%c0_9, %c0_10] : memref<16x128xbf16, #tpu.memory_space<vmem>>, vector<16x128xbf16>
    %cst_11 = arith.constant dense<0.000000e+00> : vector<8x128xf32>
    %10 = tpu.matmul %8, %9, %cst_11 {dimension_numbers = #tpu.dot_dimension_numbers<[1], [0], [0], [1], [0, 0, 1, 1], [], []>} : vector<8x16xbf16>, vector<16x128xbf16>, vector<8x128xf32> -> vector<8x128xf32>
    %c0_12 = arith.constant 0 : index
    %c0_13 = arith.constant 0 : index
    %11 = vector.load %arg6[%c0_12, %c0_13] : memref<1x128xf32, #tpu.memory_space<vmem>>, vector<1x128xf32>
    %12 = vector.broadcast %11 : vector<1x128xf32> to vector<8x128xf32>
    %13 = arith.addf %10, %12 : vector<8x128xf32>
    %14 = arith.truncf %13 : vector<8x128xf32> to vector<8x128xbf16>
    %c0_14 = arith.constant 0 : index
    %c0_15 = arith.constant 0 : index
    %15 = vector.load %arg8[%c0_14, %c0_15] : memref<8x128xbf16, #tpu.memory_space<vmem>>, vector<8x128xbf16>
    tpu.vector_store %arg8[%c0_14, %c0_15], %14 {strides = array<i32>} : memref<8x128xbf16, #tpu.memory_space<vmem>>, vector<8x128xbf16>,
    return
  }
  func.func @transform_0(%arg0: i32) -> (i32, i32) {
    %c0_i32 = arith.constant 0 : i32
    %c0_i32_0 = arith.constant 0 : i32
    return %arg0, %c0_i32 : i32, i32
  }
  func.func @transform_1(%arg0: i32) -> (i32, i32) {
    %c0_i32 = arith.constant 0 : i32
    %c0_i32_0 = arith.constant 0 : i32
    %c0_i32_1 = arith.constant 0 : i32
    return %c0_i32, %c0_i32_0 : i32, i32
  }
  func.func @transform_2(%arg0: i32) -> (i32, i32) {
    %c0_i32 = arith.constant 0 : i32
    %c0_i32_0 = arith.constant 0 : i32
    %c0_i32_1 = arith.constant 0 : i32
    return %c0_i32, %c0_i32_0 : i32, i32
  }
  func.func @transform_3(%arg0: i32) -> (i32, i32) {
    %c0_i32 = arith.constant 0 : i32
    %c0_i32_0 = arith.constant 0 : i32
    return %arg0, %c0_i32 : i32, i32
  }
  func.func @transform_4(%arg0: i32) -> (i32, i32) {
    %c0_i32 = arith.constant 0 : i32
    %c0_i32_0 = arith.constant 0 : i32
    %c0_i32_1 = arith.constant 0 : i32
    return %c0_i32, %c0_i32_0 : i32, i32
  }
  func.func @transform_5(%arg0: i32) -> (i32, i32) {
    %c0_i32 = arith.constant 0 : i32
    %c0_i32_0 = arith.constant 0 : i32
    %c0_i32_1 = arith.constant 0 : i32
    return %c0_i32, %c0_i32_0 : i32, i32
  }
  func.func @transform_6(%arg0: i32) -> (i32, i32) {
    %c0_i32 = arith.constant 0 : i32
    %c0_i32_0 = arith.constant 0 : i32
    return %arg0, %c0_i32 : i32, i32
  }
  func.func @transform_7(%arg0: i32) -> (i32, i32) {
    %c0_i32 = arith.constant 0 : i32
    %c0_i32_0 = arith.constant 0 : i32
    return %arg0, %c0_i32 : i32, i32
  }
}

</mosaic_0001>

<llo_original>
// kernel: tpu_custom_call.1
$region0: #{tpu_custom_call.1}
  #allocation0 [shape = 'u32[]', space=smem, size = 0x4, offset = 0x4, fixed_abs, tag = 'smem constant byte address 0x4 - core index']
  #allocation1 [shape = 'u32[72,128]{1,0:T(1,128)}', space=vmem, size = 0x9000, scoped, tag = 'internal scratch']
  %s0 = inlined_call_operand.hbm [shape: bf16[8,16], index: 0, kind: input, shape index: {}]
  %s1 = inlined_call_operand.hbm [shape: bf16[16,128], index: 1, kind: input, shape index: {}]
  %s2 = inlined_call_operand.vmem [shape: f32[1,128], index: 2, kind: input, shape index: {}]
  %s3 = inlined_call_operand.hbm [shape: bf16[8,16], index: 3, kind: input, shape index: {}]
  %s4 = inlined_call_operand.hbm [shape: bf16[16,128], index: 4, kind: input, shape index: {}]
  %s5 = inlined_call_operand.vmem [shape: f32[1,128], index: 5, kind: input, shape index: {}]
  %s6 = inlined_call_operand.hbm [shape: bf16[8,128], index: 6, kind: output, shape index: {0}]
  %s7 = inlined_call_operand.hbm [shape: bf16[8,128], index: 7, kind: output, shape index: {1}]
  %8 = xla_tuple %s6, %s7
  %s9 = sld [smem:[#allocation0]]
  $region58: #{tpu_custom_call.1} parent=0
    _
  %s11 = ssub.s32 1, %s9
  %s12 = scalar_select 0, %s11, %s9
  $region1: #{tpu_custom_call.1} parent=0
    #allocation2 [shape = 'u8[2048]{0}', space=vmem, size = 0x800, scoped, tag = 'input window, operand 0, single buffered']
    #allocation3 [shape = 's32[1]{0}', space=sflag, size = 0x4, scoped, tag = 'scoped memory for tpu_custom_call.1']
    #allocation4 [shape = 's32[1]{0}', space=sflag, size = 0x4, scoped, tag = 'scoped memory for tpu_custom_call.1']
    #allocation5 [shape = 'u8[4096]{0}', space=vmem, size = 0x1000, scoped, tag = 'input window, operand 1, single buffered']
    #allocation6 [shape = 's32[1]{0}', space=sflag, size = 0x4, scoped, tag = 'scoped memory for tpu_custom_call.1']
    #allocation7 [shape = 'u8[2048]{0}', space=vmem, size = 0x800, scoped, tag = 'input window, operand 3, single buffered']
    #allocation8 [shape = 'u8[4096]{0}', space=vmem, size = 0x1000, scoped, tag = 'input window, operand 4, single buffered']
    #allocation9 [shape = 's32[1]{0}', space=sflag, size = 0x4, scoped, tag = 'scoped memory for tpu_custom_call.1']
    #allocation10 [shape = 'u8[2048]{0}', space=vmem, size = 0x800, scoped, tag = 'output window, operand 0, single buffered']
    #allocation11 [shape = 'u8[2048]{0}', space=vmem, size = 0x800, scoped, tag = 'output window, operand 1, single buffered']
    #allocation12 [shape = 's32[1]{0}', space=sflag, size = 0x4, scoped, tag = 'scoped memory for tpu_custom_call.1']
    %13 = vsyncpa [#allocation3], 0
    %14 = vsyncpa [#allocation6], 0
    %15 = vsyncpa [#allocation9], 0
    %16 = vsyncpa [#allocation4], 0
    %17 = vsyncpa [#allocation12], 0
    // Predicated region
    $region2: #{tpu_custom_call.1} parent=1 // pred_check
      _
    $region3: #{tpu_custom_call.1} parent=1 // pred_check_branch
      %19 = sbr.rel (0) target = $region5
    $region4: #{tpu_custom_call.1} parent=1 // pred_region
      %21 = vsyncadd [#allocation3], 0
      %s23 = sshll.u32 %s0, 4
      %s24 = int_to_ptr.hbm [resolvable:$true] %s23
      %s25 = sshll.u32 [#allocation2], 4
      %s26 = int_to_ptr.vmem [resolvable:$true] %s25
      %28 = dma.hbm_to_vmem [thread:$0]  %s24, 64, %s26, [#allocation3]
    $region5: #{tpu_custom_call.1} parent=1 // pred_fallthru
      _
    // Predicated region
    $region6: #{tpu_custom_call.1} parent=1 // pred_check
      _
    $region7: #{tpu_custom_call.1} parent=1 // pred_check_branch
      %30 = sbr.rel (0) target = $region9
    $region8: #{tpu_custom_call.1} parent=1 // pred_region
      %32 = vsyncadd [#allocation6], 0
      %s33 = sshll.u32 %s1, 4
      %s34 = int_to_ptr.hbm [resolvable:$true] %s33
      %s35 = sshll.u32 [#allocation5], 4
      %s36 = int_to_ptr.vmem [resolvable:$true] %s35
      %41 = dma.hbm_to_vmem [thread:$0]  %s34, 128, %s36, [#allocation6], 64, 64, 4
    $region9: #{tpu_custom_call.1} parent=1 // pred_fallthru
      _
    // Predicated region
    $region10: #{tpu_custom_call.1} parent=1 // pred_check
      _
    $region11: #{tpu_custom_call.1} parent=1 // pred_check_branch
      %43 = sbr.rel (0) target = $region13
    $region12: #{tpu_custom_call.1} parent=1 // pred_region
      _
    $region13: #{tpu_custom_call.1} parent=1 // pred_fallthru
      _
    // Predicated region
    $region14: #{tpu_custom_call.1} parent=1 // pred_check
      _
    $region15: #{tpu_custom_call.1} parent=1 // pred_check_branch
      %45 = sbr.rel (0) target = $region17
    $region16: #{tpu_custom_call.1} parent=1 // pred_region
      %47 = vsyncadd [#allocation6], 0
      %s49 = sshll.u32 %s3, 4
      %s50 = int_to_ptr.hbm [resolvable:$true] %s49
      %s51 = sshll.u32 [#allocation7], 4
      %s52 = int_to_ptr.vmem [resolvable:$true] %s51
      %54 = dma.hbm_to_vmem [thread:$0]  %s50, 64, %s52, [#allocation6]
    $region17: #{tpu_custom_call.1} parent=1 // pred_fallthru
      _
    // Predicated region
    $region18: #{tpu_custom_call.1} parent=1 // pred_check
      _
    $region19: #{tpu_custom_call.1} parent=1 // pred_check_branch
      %56 = sbr.rel (0) target = $region21
    $region20: #{tpu_custom_call.1} parent=1 // pred_region
      %58 = vsyncadd [#allocation9], 0
      %s59 = sshll.u32 %s4, 4
      %s60 = int_to_ptr.hbm [resolvable:$true] %s59
      %s61 = sshll.u32 [#allocation8], 4
      %s62 = int_to_ptr.vmem [resolvable:$true] %s61
      %67 = dma.hbm_to_vmem [thread:$0]  %s60, 128, %s62, [#allocation9], 64, 64, 4
    $region21: #{tpu_custom_call.1} parent=1 // pred_fallthru
      _
    // Predicated region
    $region22: #{tpu_custom_call.1} parent=1 // pred_check
      _
    $region23: #{tpu_custom_call.1} parent=1 // pred_check_branch
      %69 = sbr.rel (0) target = $region25
    $region24: #{tpu_custom_call.1} parent=1 // pred_region
      _
    $region25: #{tpu_custom_call.1} parent=1 // pred_fallthru
      _
    // Predicated region
    $region26: #{tpu_custom_call.1} parent=1 // pred_check
      _
    $region27: #{tpu_custom_call.1} parent=1 // pred_check_branch
      %71 = sbr.rel (0) target = $region29
    $region28: #{tpu_custom_call.1} parent=1 // pred_region
      %73 = dma.done [#allocation3], 64
    $region29: #{tpu_custom_call.1} parent=1 // pred_fallthru
      _
    // Predicated region
    $region30: #{tpu_custom_call.1} parent=1 // pred_check
      _
    $region31: #{tpu_custom_call.1} parent=1 // pred_check_branch
      %75 = sbr.rel (0) target = $region33
    $region32: #{tpu_custom_call.1} parent=1 // pred_region
      %77 = dma.done [#allocation6], 128
    $region33: #{tpu_custom_call.1} parent=1 // pred_fallthru
      _
    // Predicated region
    $region34: #{tpu_custom_call.1} parent=1 // pred_check
      _
    $region35: #{tpu_custom_call.1} parent=1 // pred_check_branch
      %79 = sbr.rel (0) target = $region37
    $region36: #{tpu_custom_call.1} parent=1 // pred_region
      %81 = dma.done [#allocation6], 64
    $region37: #{tpu_custom_call.1} parent=1 // pred_fallthru
      _
    // Predicated region
    $region38: #{tpu_custom_call.1} parent=1 // pred_check
      _
    $region39: #{tpu_custom_call.1} parent=1 // pred_check_branch
      %83 = sbr.rel (0) target = $region41
    $region40: #{tpu_custom_call.1} parent=1 // pred_region
      %85 = dma.done [#allocation9], 128
    $region41: #{tpu_custom_call.1} parent=1 // pred_fallthru
      _
    %v87 = vld [vmem:[#allocation2] sm:$0xf]
    %v88 = vld [vmem:[#allocation5] sm:$0xf]
    %v89 = vld [vmem:[#allocation5 + $0x4] sm:$0xf]
    %v90 = vld [vmem:[%s2] sm:$0x1]
    %v92 = vperm.slane %v90, 0
    %v96 = vunpack.c.l.b16 %v88
    %v97 = vunpack.c.l.b16 %v89
    %v98 = vpack.c.b16 %v97, %v96
    %vm100 = vcmask 130048
    %v102 = vsel %vm100, %v87, 0
    %104 = vmatpush.bf16.msra.mxu0 0
    %105 = vmatpush.bf16.msra.mxu0 0
    %106 = vmatpush.bf16.msra.mxu0 0
    %107 = vmatpush.bf16.msra.mxu0 0
    %108 = vmatpush.bf16.msra.mxu0 0
    %109 = vmatpush.bf16.msra.mxu0 0
    %110 = vmatpush.bf16.msra.mxu0 0
    %111 = vmatpush.bf16.msra.mxu0 %v98
    %112 = vmatmul.bf16.gmra.mxu0 %v102
    %v113 = vpop.f32.mrf.mxu0
    %v114 = vadd.f32 %v92, %v113
    %v115 = vpop.f32.mrf.mxu0
    %116 = vdwg.mxu0
    %v117 = vpack.c.bf16 %v114, %v114
    %118 = vst [vmem:[#allocation10] sm:$0xf] %v117
    %v119 = vld [vmem:[#allocation7] sm:$0xf]
    %v120 = vld [vmem:[#allocation8] sm:$0xf]
    %v121 = vld [vmem:[#allocation8 + $0x4] sm:$0xf]
    %v122 = vld [vmem:[%s5] sm:$0x1]
    %v124 = vperm.slane %v122, 0
    %v128 = vunpack.c.l.b16 %v120
    %v129 = vunpack.c.l.b16 %v121
    %v130 = vpack.c.b16 %v129, %v128
    %v133 = vsel %vm100, %v119, 0
    %135 = vmatpush.bf16.msra.mxu0 0
    %136 = vmatpush.bf16.msra.mxu0 0
    %137 = vmatpush.bf16.msra.mxu0 0
    %138 = vmatpush.bf16.msra.mxu0 0
    %139 = vmatpush.bf16.msra.mxu0 0
    %140 = vmatpush.bf16.msra.mxu0 0
    %141 = vmatpush.bf16.msra.mxu0 0
    %142 = vmatpush.bf16.msra.mxu0 %v130
    %143 = vmatmul.bf16.gmra.mxu0 %v133
    %v144 = vpop.f32.mrf.mxu0
    %v145 = vadd.f32 %v124, %v144
    %v146 = vpop.f32.mrf.mxu0
    %147 = vdwg.mxu0
    %v148 = vpack.c.bf16 %v145, %v145
    %149 = vst [vmem:[#allocation11] sm:$0xf] %v148
    // Predicated region
    $region42: #{tpu_custom_call.1} parent=1 // pred_check
      _
    $region43: #{tpu_custom_call.1} parent=1 // pred_check_branch
      %151 = sbr.rel (0) target = $region45
    $region44: #{tpu_custom_call.1} parent=1 // pred_region
      %153 = vsyncadd [#allocation4], 0
      %s155 = sshll.u32 [#allocation10], 4
      %s156 = int_to_ptr.vmem [resolvable:$true] %s155
      %s157 = sshll.u32 %s6, 4
      %s158 = int_to_ptr.hbm [resolvable:$true] %s157
      %160 = dma.vmem_to_hbm [thread:$0]  %s156, 64, %s158, [#allocation4]
    $region45: #{tpu_custom_call.1} parent=1 // pred_fallthru
      _
    // Predicated region
    $region46: #{tpu_custom_call.1} parent=1 // pred_check
      _
    $region47: #{tpu_custom_call.1} parent=1 // pred_check_branch
      %162 = sbr.rel (0) target = $region49
    $region48: #{tpu_custom_call.1} parent=1 // pred_region
      %164 = vsyncadd [#allocation12], 0
      %s166 = sshll.u32 [#allocation11], 4
      %s167 = int_to_ptr.vmem [resolvable:$true] %s166
      %s168 = sshll.u32 %s7, 4
      %s169 = int_to_ptr.hbm [resolvable:$true] %s168
      %171 = dma.vmem_to_hbm [thread:$0]  %s167, 64, %s169, [#allocation12]
    $region49: #{tpu_custom_call.1} parent=1 // pred_fallthru
      _
    // Predicated region
    $region50: #{tpu_custom_call.1} parent=1 // pred_check
      _
    $region51: #{tpu_custom_call.1} parent=1 // pred_check_branch
      %173 = sbr.rel (0) target = $region53
    $region52: #{tpu_custom_call.1} parent=1 // pred_region
      %175 = dma.done [#allocation4], 64
    $region53: #{tpu_custom_call.1} parent=1 // pred_fallthru
      _
    // Predicated region
    $region54: #{tpu_custom_call.1} parent=1 // pred_check
      _
    $region55: #{tpu_custom_call.1} parent=1 // pred_check_branch
      %177 = sbr.rel (0) target = $region57
    $region56: #{tpu_custom_call.1} parent=1 // pred_region
      %179 = dma.done [#allocation12], 64
    $region57: #{tpu_custom_call.1} parent=1 // pred_fallthru
      _
    %180 = vsyncpa [#allocation3], 1
    %181 = vsyncpa [#allocation6], 1
    %182 = vsyncpa [#allocation9], 1
    %183 = vsyncpa [#allocation4], 1
    %184 = vsyncpa [#allocation12], 1

</llo_original>
